<compile_context>
chip_gen: v7x
topology: tpu7x:2x2x1
jax: 0.10.0
libtpu: 0.0.40
codegen_flags: <defaults>
</compile_context>

<pallas_src>
import functools

import jax
import jax.numpy as jnp
from jax import lax
from jax.experimental import pallas as pl
from jax.experimental.pallas import tpu as pltpu


# ----------------------------- Pallas kernel ---------------------------------
def _basic_block_kernel(x_ref, w1_ref, b1_ref, w2_ref, b2_ref, o_ref, *, h, w, b_tile):
    """Fused BasicBlock forward for `b_tile` images.

    x_ref  : f32[b_tile, Cin, H*W]       unpadded input, flat row-major spatial
    w1_ref : bf16/f32[Cmid, 9*Cin]       conv1 weights (bn1 folded), tap-major
    b1_ref : f32[Cmid, 1]                folded bn1 bias
    w2_ref : bf16/f32[Cout, 9*Cmid]      conv2 weights (bn2 folded)
    b2_ref : f32[Cout, 1]                folded bn2 bias
    o_ref  : f32[b_tile, Cout, H*W]      relu(conv2(relu(conv1(x))) + x)
    """
    hw = h * w
    mxu_dtype = w1_ref.dtype

    # Column-validity masks (in-kernel iota; columns are image-contiguous so % w works
    # for any b_tile).  Only dx==0 / dx==2 taps can wrap across a row boundary.
    col = lax.broadcasted_iota(jnp.int32, (1, b_tile * hw), 1) % w
    mask_l = (col > 0).astype(jnp.float32)        # dx == 0: col 0 has no left neighbour
    mask_r = (col < w - 1).astype(jnp.float32)    # dx == 2: col W-1 has no right neighbour

    def pad_flat(img2d):
        # [C, H*W] -> [C, (W+1) + H*W + (W+1)]; the flat zero halo absorbs all
        # out-of-range *row* accesses of the 9 tap slices.
        z = jnp.zeros((img2d.shape[0], w + 1), jnp.float32)
        return jnp.concatenate([z, img2d, z], axis=1)

    def conv3x3(imgs, w_ref_, b_ref_):
        # imgs: list of b_tile arrays [C, H*W] (f32).  Returns f32[C_out, b_tile*H*W].
        padded = [pad_flat(a) for a in imgs]
        rows = []
        for dy in range(3):
            for dx in range(3):
                off = dy * w + dx                              # tap offset in the flat halo buffer
                if b_tile > 1:
                    sl = jnp.concatenate([p[:, off:off + hw] for p in padded], axis=1)
                else:
                    sl = padded[0][:, off:off + hw]
                if dx == 0:
                    sl = sl * mask_l
                elif dx == 2:
                    sl = sl * mask_r
                rows.append(sl.astype(mxu_dtype))              # cast per-slice (halves copy bytes)
            # tap-major row order matches the [C_out, 9*C_in] weight layout
        rhs = jnp.concatenate(rows, axis=0)                    # [9*C_in, b_tile*H*W]
        return jnp.dot(w_ref_[...], rhs, preferred_element_type=jnp.float32) + b_ref_[...]

    x = x_ref[...]                                             # [b_tile, Cin, H*W] f32
    x_imgs = [x[b] for b in range(b_tile)]

    # ---- conv1 (+ folded bn1) + relu ----
    h1 = jnp.maximum(conv3x3(x_imgs, w1_ref, b1_ref), 0.0)     # [Cmid, b_tile*H*W] f32

    # ---- conv2 (+ folded bn2) ----
    h1_imgs = [h1[:, b * hw:(b + 1) * hw] for b in range(b_tile)]
    h2 = conv3x3(h1_imgs, w2_ref, b2_ref)                      # [Cout, b_tile*H*W] f32

    # ---- residual add_relu (downsample=None path: identity == x) ----
    identity = jnp.concatenate(x_imgs, axis=1) if b_tile > 1 else x_imgs[0]
    out = jnp.maximum(h2 + identity, 0.0)

    for b in range(b_tile):
        o_ref[b] = out[:, b * hw:(b + 1) * hw]


# ------------------------------ JAX wrapper -----------------------------------
def _fold_bn(w, gamma, beta, mean, var, eps=1e-5):
    """Fold eval-mode BatchNorm into a bias-free conv: returns (w_folded, b_folded)."""
    s = gamma / jnp.sqrt(var + eps)
    return w * s[:, None, None, None], beta - mean * s


def _pick_batch_tile(n, cin, cmid, cout, hw, vmem_budget_bytes=24 << 20):
    """Largest batch tile that keeps the grid >= 2 (two TensorCores on v7x) and fits a
    conservative VMEM budget sized for v7x's 64 MiB (so it also fits v5e/v6e)."""
    # rough per-image f32 bytes: double-buffered in/out blocks + two im2col stacks
    # + intermediate activation + flat-halo temporaries.
    per_img = 4 * hw * (2 * cin + 2 * cout + 9 * cin + 9 * cmid + cmid + 2 * cin)
    max_by_vmem = max(1, vmem_budget_bytes // max(per_img, 1))
    best = 1
    for d in range(1, n + 1):
        if n % d == 0 and d <= max_by_vmem and n // d >= 2:
            best = d
    return best


def residual_basic_block(x, w1, bn1, w2, bn2, eps=1e-5, mxu_dtype=jnp.bfloat16):
    """ResidualAddWrapper forward (downsample=None, stride 1).

    x   : f32[N, C, H, W]
    w1  : f32[Cmid, C, 3, 3]     conv1 weight (bias=False)
    bn1 : (gamma, beta, running_mean, running_var)
    w2  : f32[C, Cmid, 3, 3]     conv2 weight (bias=False)
    bn2 : (gamma, beta, running_mean, running_var)
    """
    # TODO(synk): downsample branch (1x1 strided conv + BN on the identity path) is not
    # implemented; only the downsample=None BasicBlock (Cin == Cout, stride 1) is modeled.
    n, cin, h, w = x.shape
    cmid = w1.shape[0]
    cout = w2.shape[0]
    if cout != cin:
        raise NotImplementedError("downsample=None path requires Cin == Cout (stride 1)")
    hw = h * w

    # Fold BN into the convs; tap-major weight layout [C_out, 9*C_in]; MXU-dtype weights
    # live in HBM (halves weight DMA for bf16), biases stay f32 for the VPU add.
    w1f, b1f = _fold_bn(w1, *bn1, eps=eps)
    w2f, b2f = _fold_bn(w2, *bn2, eps=eps)
    w1m = jnp.transpose(w1f, (0, 2, 3, 1)).reshape(cmid, 9 * cin).astype(mxu_dtype)
    w2m = jnp.transpose(w2f, (0, 2, 3, 1)).reshape(cout, 9 * cmid).astype(mxu_dtype)
    b1c = b1f.reshape(cmid, 1).astype(jnp.float32)
    b2c = b2f.reshape(cout, 1).astype(jnp.float32)

    # Free metadata reshape only — no pad, no extra HBM traffic.
    x_flat = x.astype(jnp.float32).reshape(n, cin, hw)

    b_tile = _pick_batch_tile(n, cin, cmid, cout, hw)
    grid = (n // b_tile,)

    kernel = functools.partial(_basic_block_kernel, h=h, w=w, b_tile=b_tile)

    out_flat = pl.pallas_call(
        kernel,
        out_shape=jax.ShapeDtypeStruct((n, cout, hw), jnp.float32),
        grid_spec=pltpu.PrefetchScalarGridSpec(
            num_scalar_prefetch=0,
            grid=grid,
            in_specs=[
                pl.BlockSpec((b_tile, cin, hw), lambda i: (i, 0, 0)),     # input images
                pl.BlockSpec((cmid, 9 * cin), lambda i: (0, 0)),          # conv1 folded weight
                pl.BlockSpec((cmid, 1), lambda i: (0, 0)),                # conv1 folded bias
                pl.BlockSpec((cout, 9 * cmid), lambda i: (0, 0)),         # conv2 folded weight
                pl.BlockSpec((cout, 1), lambda i: (0, 0)),                # conv2 folded bias
            ],
            out_specs=pl.BlockSpec((b_tile, cout, hw), lambda i: (i, 0, 0)),
        ),
        compiler_params=pltpu.CompilerParams(dimension_semantics=("parallel",)),
    )(x_flat, w1m, b1c, w2m, b2c)

    # Pure metadata reshape back to NCHW (no crop, no copy).
    return out_flat.reshape(n, cout, h, w)


# ------------------------------ reference -------------------------------------
def _reference(x, w1, bn1, w2, bn2, eps=1e-5):
    def conv(z, wgt):
        return lax.conv_general_dilated(z, wgt, (1, 1), ((1, 1), (1, 1)),
                                        dimension_numbers=("NCHW", "OIHW", "NCHW"))

    def bn(z, p):
        g, b, m, v = p
        inv = (g / jnp.sqrt(v + eps))[None, :, None, None]
        return (z - m[None, :, None, None]) * inv + b[None, :, None, None]

    out = jax.nn.relu(bn(conv(x, w1), bn1))
    out = bn(conv(out, w2), bn2)
    return jax.nn.relu(out + x)                    # skip_add.add_relu, downsample=None


# --------------------------------- demo ---------------------------------------
if __name__ == "__main__":
    keys = jax.random.split(jax.random.PRNGKey(0), 12)
    N, C, H, W = 2, 4, 16, 16

    x = jax.random.normal(keys[0], (N, C, H, W), dtype=jnp.float32)
    fan_in = C * 9
    w1 = jax.random.normal(keys[1], (C, C, 3, 3), jnp.float32) / jnp.sqrt(fan_in)
    w2 = jax.random.normal(keys[2], (C, C, 3, 3), jnp.float32) / jnp.sqrt(fan_in)
    bn1 = (jax.random.uniform(keys[3], (C,), jnp.float32, 0.5, 1.5),    # gamma
           0.1 * jax.random.normal(keys[4], (C,), jnp.float32),         # beta
           0.2 * jax.random.normal(keys[5], (C,), jnp.float32),         # running_mean
           jax.random.uniform(keys[6], (C,), jnp.float32, 0.5, 1.5))    # running_var
    bn2 = (jax.random.uniform(keys[7], (C,), jnp.float32, 0.5, 1.5),
           0.1 * jax.random.normal(keys[8], (C,), jnp.float32),
           0.2 * jax.random.normal(keys[9], (C,), jnp.float32),
           jax.random.uniform(keys[10], (C,), jnp.float32, 0.5, 1.5))

    ref = _reference(x, w1, bn1, w2, bn2)

    # Perf path: bf16 MXU operands, f32 accumulation (loose tolerance covers bf16 rounding).
    out = jax.block_until_ready(residual_basic_block(x, w1, bn1, w2, bn2))
    assert out.shape == (N, C, H, W)
    assert jnp.allclose(out, ref, atol=1e-1, rtol=1e-1), float(jnp.max(jnp.abs(out - ref)))

    # Structural exactness check: same kernel with f32 MXU operands, tight tolerance.
    out32 = jax.block_until_ready(
        residual_basic_block(x, w1, bn1, w2, bn2, mxu_dtype=jnp.float32))
    assert jnp.allclose(out32, ref, atol=1e-3, rtol=1e-3), float(jnp.max(jnp.abs(out32 - ref)))

    print("KERNEL_OK")
</pallas_src>

<mosaic_0001>
module attributes {stable_mosaic.version = 11 : i64} {
  func.func @_basic_block_kernel(%arg0: i32, %arg1: memref<1x4x256xf32, #tpu.memory_space<vmem>>, %arg2: memref<4x36xbf16, #tpu.memory_space<vmem>>, %arg3: memref<4x1xf32, #tpu.memory_space<vmem>>, %arg4: memref<4x36xbf16, #tpu.memory_space<vmem>>, %arg5: memref<4x1xf32, #tpu.memory_space<vmem>>, %arg6: memref<1x4x256xf32, #tpu.memory_space<vmem>>) attributes {dimension_semantics = [#tpu.dimension_semantics<parallel>], iteration_bounds = array<i64: 2>, scalar_prefetch = 0 : i64, scratch_operands = 0 : i64, tpu.core_type = #tpu.core_type<tc>, window_params = [{transform_indices = @transform_0, window_bounds = array<i64: 1, 4, 256>}, {pipeline_mode = #tpu.pipeline_mode<synchronous>, transform_indices = @transform_1, window_bounds = array<i64: 4, 36>}, {pipeline_mode = #tpu.pipeline_mode<synchronous>, transform_indices = @transform_2, window_bounds = array<i64: 4, 1>}, {pipeline_mode = #tpu.pipeline_mode<synchronous>, transform_indices = @transform_3, window_bounds = array<i64: 4, 36>}, {pipeline_mode = #tpu.pipeline_mode<synchronous>, transform_indices = @transform_4, window_bounds = array<i64: 4, 1>}, {transform_indices = @transform_5, window_bounds = array<i64: 1, 4, 256>}]} {
    %0 = tpu.iota {dimensions = array<i32: 1>} : vector<1x256xi32>
    %c16_i32 = arith.constant 16 : i32
    %c0_i32 = arith.constant 0 : i32
    %1 = arith.cmpi eq, %c16_i32, %c0_i32 : i32
    %c1_i32 = arith.constant 1 : i32
    %2 = arith.select %1, %c1_i32, %c16_i32 : i32
    %3 = vector.broadcast %2 : i32 to vector<1x256xi32>
    %4 = arith.remsi %0, %3 : vector<1x256xi32>
    %c0_i32_0 = arith.constant 0 : i32
    %5 = vector.broadcast %c0_i32_0 : i32 to vector<1x256xi32>
    %6 = arith.cmpi ne, %4, %5 : vector<1x256xi32>
    %c0_i32_1 = arith.constant 0 : i32
    %7 = vector.broadcast %c0_i32_1 : i32 to vector<1x256xi32>
    %8 = arith.cmpi slt, %4, %7 : vector<1x256xi32>
    %c0_i32_2 = arith.constant 0 : i32
    %9 = arith.cmpi slt, %2, %c0_i32_2 : i32
    %10 = vector.broadcast %9 : i1 to vector<1x256xi1>
    %11 = vector.broadcast %10 : vector<1x256xi1> to vector<1x256xi1>
    %12 = arith.xori %8, %11 : vector<1x256xi1>
    %13 = arith.andi %12, %6 : vector<1x256xi1>
    %14 = vector.broadcast %2 : i32 to vector<1x256xi32>
    %15 = arith.addi %4, %14 : vector<1x256xi32>
    %16 = arith.select %13, %15, %4 : vector<1x256xi1>, vector<1x256xi32>
    %c0_i32_3 = arith.constant 0 : i32
    %17 = vector.broadcast %c0_i32_3 : i32 to vector<1x256xi32>
    %18 = arith.cmpi sgt, %16, %17 : vector<1x256xi32>
    %19 = arith.extui %18 : vector<1x256xi1> to vector<1x256xi32>
    %20 = arith.sitofp %19 : vector<1x256xi32> to vector<1x256xf32>
    %c15_i32 = arith.constant 15 : i32
    %21 = vector.broadcast %c15_i32 : i32 to vector<1x256xi32>
    %22 = arith.cmpi slt, %16, %21 : vector<1x256xi32>
    %23 = arith.extui %22 : vector<1x256xi1> to vector<1x256xi32>
    %24 = arith.sitofp %23 : vector<1x256xi32> to vector<1x256xf32>
    %c0 = arith.constant 0 : index
    %c0_4 = arith.constant 0 : index
    %c0_5 = arith.constant 0 : index
    %25 = vector.load %arg1[%c0, %c0_4, %c0_5] : memref<1x4x256xf32, #tpu.memory_space<vmem>>, vector<1x4x256xf32>
    %26 = vector.shape_cast %25 : vector<1x4x256xf32> to vector<4x256xf32>
    %cst = arith.constant 0.000000e+00 : f32
    %27 = vector.broadcast %cst : f32 to vector<4x17xf32>
    %28 = tpu.concatenate %27, %26, %27 in 1 : vector<4x17xf32>, vector<4x256xf32>, vector<4x17xf32> -> vector<4x290xf32>
    %29 = vector.extract_strided_slice %28 {offsets = [0, 0], sizes = [4, 256], strides = [1, 1]} : vector<4x290xf32> to vector<4x256xf32>
    %30 = vector.broadcast %20 : vector<1x256xf32> to vector<4x256xf32>
    %31 = arith.mulf %29, %30 : vector<4x256xf32>
    %32 = arith.truncf %31 : vector<4x256xf32> to vector<4x256xbf16>
    %33 = vector.extract_strided_slice %28 {offsets = [0, 1], sizes = [4, 256], strides = [1, 1]} : vector<4x290xf32> to vector<4x256xf32>
    %34 = arith.truncf %33 : vector<4x256xf32> to vector<4x256xbf16>
    %35 = vector.extract_strided_slice %28 {offsets = [0, 2], sizes = [4, 256], strides = [1, 1]} : vector<4x290xf32> to vector<4x256xf32>
    %36 = vector.broadcast %24 : vector<1x256xf32> to vector<4x256xf32>
    %37 = arith.mulf %35, %36 : vector<4x256xf32>
    %38 = arith.truncf %37 : vector<4x256xf32> to vector<4x256xbf16>
    %39 = vector.extract_strided_slice %28 {offsets = [0, 16], sizes = [4, 256], strides = [1, 1]} : vector<4x290xf32> to vector<4x256xf32>
    %40 = vector.broadcast %20 : vector<1x256xf32> to vector<4x256xf32>
    %41 = arith.mulf %39, %40 : vector<4x256xf32>
    %42 = arith.truncf %41 : vector<4x256xf32> to vector<4x256xbf16>
    %43 = vector.extract_strided_slice %28 {offsets = [0, 17], sizes = [4, 256], strides = [1, 1]} : vector<4x290xf32> to vector<4x256xf32>
    %44 = arith.truncf %43 : vector<4x256xf32> to vector<4x256xbf16>
    %45 = vector.extract_strided_slice %28 {offsets = [0, 18], sizes = [4, 256], strides = [1, 1]} : vector<4x290xf32> to vector<4x256xf32>
    %46 = vector.broadcast %24 : vector<1x256xf32> to vector<4x256xf32>
    %47 = arith.mulf %45, %46 : vector<4x256xf32>
    %48 = arith.truncf %47 : vector<4x256xf32> to vector<4x256xbf16>
    %49 = vector.extract_strided_slice %28 {offsets = [0, 32], sizes = [4, 256], strides = [1, 1]} : vector<4x290xf32> to vector<4x256xf32>
    %50 = vector.broadcast %20 : vector<1x256xf32> to vector<4x256xf32>
    %51 = arith.mulf %49, %50 : vector<4x256xf32>
    %52 = arith.truncf %51 : vector<4x256xf32> to vector<4x256xbf16>
    %53 = vector.extract_strided_slice %28 {offsets = [0, 33], sizes = [4, 256], strides = [1, 1]} : vector<4x290xf32> to vector<4x256xf32>
    %54 = arith.truncf %53 : vector<4x256xf32> to vector<4x256xbf16>
    %55 = vector.extract_strided_slice %28 {offsets = [0, 34], sizes = [4, 256], strides = [1, 1]} : vector<4x290xf32> to vector<4x256xf32>
    %56 = vector.broadcast %24 : vector<1x256xf32> to vector<4x256xf32>
    %57 = arith.mulf %55, %56 : vector<4x256xf32>
    %58 = arith.truncf %57 : vector<4x256xf32> to vector<4x256xbf16>
    %59 = tpu.concatenate %32, %34, %38, %42, %44, %48, %52, %54, %58 in 0 : vector<4x256xbf16>, vector<4x256xbf16>, vector<4x256xbf16>, vector<4x256xbf16>, vector<4x256xbf16>, vector<4x256xbf16>, vector<4x256xbf16>, vector<4x256xbf16>, vector<4x256xbf16> -> vector<36x256xbf16>
    %c0_6 = arith.constant 0 : index
    %c0_7 = arith.constant 0 : index
    %60 = vector.load %arg2[%c0_6, %c0_7] : memref<4x36xbf16, #tpu.memory_space<vmem>>, vector<4x36xbf16>
    %cst_8 = arith.constant dense<0.000000e+00> : vector<4x256xf32>
    %61 = tpu.matmul %60, %59, %cst_8 {dimension_numbers = #tpu.dot_dimension_numbers<[1], [0], [0], [1], [0, 0, 1, 1], [], []>} : vector<4x36xbf16>, vector<36x256xbf16>, vector<4x256xf32> -> vector<4x256xf32>
    %c0_9 = arith.constant 0 : index
    %c0_10 = arith.constant 0 : index
    %62 = vector.load %arg3[%c0_9, %c0_10] : memref<4x1xf32, #tpu.memory_space<vmem>>, vector<4x1xf32>
    %63 = vector.broadcast %62 : vector<4x1xf32> to vector<4x256xf32>
    %64 = arith.addf %61, %63 : vector<4x256xf32>
    %cst_11 = arith.constant 0.000000e+00 : f32
    %65 = vector.broadcast %cst_11 : f32 to vector<4x256xf32>
    %66 = arith.maximumf %64, %65 : vector<4x256xf32>
    %cst_12 = arith.constant 0.000000e+00 : f32
    %67 = vector.broadcast %cst_12 : f32 to vector<4x17xf32>
    %68 = tpu.concatenate %67, %66, %67 in 1 : vector<4x17xf32>, vector<4x256xf32>, vector<4x17xf32> -> vector<4x290xf32>
    %69 = vector.extract_strided_slice %68 {offsets = [0, 0], sizes = [4, 256], strides = [1, 1]} : vector<4x290xf32> to vector<4x256xf32>
    %70 = vector.broadcast %20 : vector<1x256xf32> to vector<4x256xf32>
    %71 = arith.mulf %69, %70 : vector<4x256xf32>
    %72 = arith.truncf %71 : vector<4x256xf32> to vector<4x256xbf16>
    %73 = vector.extract_strided_slice %68 {offsets = [0, 1], sizes = [4, 256], strides = [1, 1]} : vector<4x290xf32> to vector<4x256xf32>
    %74 = arith.truncf %73 : vector<4x256xf32> to vector<4x256xbf16>
    %75 = vector.extract_strided_slice %68 {offsets = [0, 2], sizes = [4, 256], strides = [1, 1]} : vector<4x290xf32> to vector<4x256xf32>
    %76 = vector.broadcast %24 : vector<1x256xf32> to vector<4x256xf32>
    %77 = arith.mulf %75, %76 : vector<4x256xf32>
    %78 = arith.truncf %77 : vector<4x256xf32> to vector<4x256xbf16>
    %79 = vector.extract_strided_slice %68 {offsets = [0, 16], sizes = [4, 256], strides = [1, 1]} : vector<4x290xf32> to vector<4x256xf32>
    %80 = vector.broadcast %20 : vector<1x256xf32> to vector<4x256xf32>
    %81 = arith.mulf %79, %80 : vector<4x256xf32>
    %82 = arith.truncf %81 : vector<4x256xf32> to vector<4x256xbf16>
    %83 = vector.extract_strided_slice %68 {offsets = [0, 17], sizes = [4, 256], strides = [1, 1]} : vector<4x290xf32> to vector<4x256xf32>
    %84 = arith.truncf %83 : vector<4x256xf32> to vector<4x256xbf16>
    %85 = vector.extract_strided_slice %68 {offsets = [0, 18], sizes = [4, 256], strides = [1, 1]} : vector<4x290xf32> to vector<4x256xf32>
    %86 = vector.broadcast %24 : vector<1x256xf32> to vector<4x256xf32>
    %87 = arith.mulf %85, %86 : vector<4x256xf32>
    %88 = arith.truncf %87 : vector<4x256xf32> to vector<4x256xbf16>
    %89 = vector.extract_strided_slice %68 {offsets = [0, 32], sizes = [4, 256], strides = [1, 1]} : vector<4x290xf32> to vector<4x256xf32>
    %90 = vector.broadcast %20 : vector<1x256xf32> to vector<4x256xf32>
    %91 = arith.mulf %89, %90 : vector<4x256xf32>
    %92 = arith.truncf %91 : vector<4x256xf32> to vector<4x256xbf16>
    %93 = vector.extract_strided_slice %68 {offsets = [0, 33], sizes = [4, 256], strides = [1, 1]} : vector<4x290xf32> to vector<4x256xf32>
    %94 = arith.truncf %93 : vector<4x256xf32> to vector<4x256xbf16>
    %95 = vector.extract_strided_slice %68 {offsets = [0, 34], sizes = [4, 256], strides = [1, 1]} : vector<4x290xf32> to vector<4x256xf32>
    %96 = vector.broadcast %24 : vector<1x256xf32> to vector<4x256xf32>
    %97 = arith.mulf %95, %96 : vector<4x256xf32>
    %98 = arith.truncf %97 : vector<4x256xf32> to vector<4x256xbf16>
    %99 = tpu.concatenate %72, %74, %78, %82, %84, %88, %92, %94, %98 in 0 : vector<4x256xbf16>, vector<4x256xbf16>, vector<4x256xbf16>, vector<4x256xbf16>, vector<4x256xbf16>, vector<4x256xbf16>, vector<4x256xbf16>, vector<4x256xbf16>, vector<4x256xbf16> -> vector<36x256xbf16>
    %c0_13 = arith.constant 0 : index
    %c0_14 = arith.constant 0 : index
    %100 = vector.load %arg4[%c0_13, %c0_14] : memref<4x36xbf16, #tpu.memory_space<vmem>>, vector<4x36xbf16>
    %cst_15 = arith.constant dense<0.000000e+00> : vector<4x256xf32>
    %101 = tpu.matmul %100, %99, %cst_15 {dimension_numbers = #tpu.dot_dimension_numbers<[1], [0], [0], [1], [0, 0, 1, 1], [], []>} : vector<4x36xbf16>, vector<36x256xbf16>, vector<4x256xf32> -> vector<4x256xf32>
    %c0_16 = arith.constant 0 : index
    %c0_17 = arith.constant 0 : index
    %102 = vector.load %arg5[%c0_16, %c0_17] : memref<4x1xf32, #tpu.memory_space<vmem>>, vector<4x1xf32>
    %103 = vector.broadcast %102 : vector<4x1xf32> to vector<4x256xf32>
    %104 = arith.addf %101, %103 : vector<4x256xf32>
    %105 = arith.addf %104, %26 : vector<4x256xf32>
    %cst_18 = arith.constant 0.000000e+00 : f32
    %106 = vector.broadcast %cst_18 : f32 to vector<4x256xf32>
    %107 = arith.maximumf %105, %106 : vector<4x256xf32>
    %c0_19 = arith.constant 0 : index
    %c0_20 = arith.constant 0 : index
    %c0_21 = arith.constant 0 : index
    %108 = vector.load %arg6[%c0_19, %c0_20, %c0_21] : memref<1x4x256xf32, #tpu.memory_space<vmem>>, vector<1x4x256xf32>
    %109 = vector.shape_cast %108 : vector<1x4x256xf32> to vector<4x256xf32>
    %110 = vector.shape_cast %107 : vector<4x256xf32> to vector<1x4x256xf32>
    tpu.vector_store %arg6[%c0_19, %c0_20, %c0_21], %110 {strides = array<i32>} : memref<1x4x256xf32, #tpu.memory_space<vmem>>, vector<1x4x256xf32>,
    return
  }
  func.func @transform_0(%arg0: i32) -> (i32, i32, i32) {
    %c0_i32 = arith.constant 0 : i32
    %c0_i32_0 = arith.constant 0 : i32
    %c0_i32_1 = arith.constant 0 : i32
    return %arg0, %c0_i32, %c0_i32_0 : i32, i32, i32
  }
  func.func @transform_1(%arg0: i32) -> (i32, i32) {
    %c0_i32 = arith.constant 0 : i32
    %c0_i32_0 = arith.constant 0 : i32
    %c0_i32_1 = arith.constant 0 : i32
    return %c0_i32, %c0_i32_0 : i32, i32
  }
  func.func @transform_2(%arg0: i32) -> (i32, i32) {
    %c0_i32 = arith.constant 0 : i32
    %c0_i32_0 = arith.constant 0 : i32
    %c0_i32_1 = arith.constant 0 : i32
    return %c0_i32, %c0_i32_0 : i32, i32
  }
  func.func @transform_3(%arg0: i32) -> (i32, i32) {
    %c0_i32 = arith.constant 0 : i32
    %c0_i32_0 = arith.constant 0 : i32
    %c0_i32_1 = arith.constant 0 : i32
    return %c0_i32, %c0_i32_0 : i32, i32
  }
  func.func @transform_4(%arg0: i32) -> (i32, i32) {
    %c0_i32 = arith.constant 0 : i32
    %c0_i32_0 = arith.constant 0 : i32
    %c0_i32_1 = arith.constant 0 : i32
    return %c0_i32, %c0_i32_0 : i32, i32
  }
  func.func @transform_5(%arg0: i32) -> (i32, i32, i32) {
    %c0_i32 = arith.constant 0 : i32
    %c0_i32_0 = arith.constant 0 : i32
    %c0_i32_1 = arith.constant 0 : i32
    return %arg0, %c0_i32, %c0_i32_0 : i32, i32, i32
  }
}

</mosaic_0001>

<llo_original>
// kernel: tpu_custom_call.1
$region0: #{tpu_custom_call.1}
  #allocation0 [shape = 'u32[]', space=smem, size = 0x4, offset = 0x4, fixed_abs, tag = 'smem constant byte address 0x4 - core index']
  #allocation1 [shape = 'u32[144,128]{1,0:T(1,128)}', space=vmem, size = 0x12000, scoped, tag = 'internal scratch']
  %s0 = inlined_call_operand.hbm [shape: f32[2,4,256], index: 0, kind: input, shape index: {}]
  %s1 = inlined_call_operand.vmem [shape: bf16[4,36], index: 1, kind: input, shape index: {}]
  %s2 = inlined_call_operand.vmem [shape: f32[4,1], index: 2, kind: input, shape index: {}]
  %s3 = inlined_call_operand.vmem [shape: bf16[4,36], index: 3, kind: input, shape index: {}]
  %s4 = inlined_call_operand.vmem [shape: f32[4,1], index: 4, kind: input, shape index: {}]
  %s5 = inlined_call_operand.hbm [shape: f32[2,4,256], index: 5, kind: output, shape index: {}]
  %s6 = sld [smem:[#allocation0]]
  $region57: #{tpu_custom_call.1} parent=0
    _
  %s8 = ssub.s32 1, %s6
  %s9 = scalar_select 0, %s8, %s6
  $region1: #{tpu_custom_call.1} parent=0
    #allocation2 [shape = 'u8[8192]{0}', space=vmem, size = 0x2000, scoped, tag = 'input window, operand 0']
    #allocation3 [shape = 's32[2]{0}', space=sflag, size = 0x8, scoped, tag = 'scoped memory for tpu_custom_call.1']
    #allocation4 [shape = 's32[2]{0}', space=sflag, size = 0x8, scoped, tag = 'scoped memory for tpu_custom_call.1']
    #allocation5 [shape = 'u8[8192]{0}', space=vmem, size = 0x2000, scoped, tag = 'output window, operand 0']
    %10 = vsyncpa [#allocation3], 0
    %s11 = scalar_lea.sflag [#allocation3], 1
    %12 = vsyncpa %s11, 0
    %13 = vsyncpa [#allocation4], 0
    %s14 = scalar_lea.sflag [#allocation4], 1
    %15 = vsyncpa %s14, 0
    loop: start=0, step=1, limit=4
    $region2: #{tpu_custom_call.1} parent=1 // loop_pre_header
      _
    $region3: #{tpu_custom_call.1} parent=1 // loop_header
      %s17 = sphi 0, %s21
      %p18 = scmp.ge.s32.totalorder %s17, 4
      %s27 = sphi 0, %s29
      %s30 = sphi 0, %s27
      %s31 = sphi 0, %s30
      %s47 = sphi 0, %s31
      %s51 = sphi 0, %s51
      %s53 = sphi 0, %s51
      %s54 = sphi 0, %s53
      %s68 = sphi 0, %s54
      %s72 = sphi 0, %s72
      %s74 = sphi 0, %s72
      %s75 = sphi 0, %s74
      %s89 = sphi 0, %s75
      %s93 = sphi 0, %s93
      %s95 = sphi 0, %s93
      %s96 = sphi 0, %s95
      %s110 = sphi 0, %s96
      %s114 = sphi 0, %s114
      %s116 = sphi 0, %s114
      %s117 = sphi 0, %s116
      %s131 = sphi 0, %s117
      %s137 = sphi 0, %s139
      %s140 = sphi 0, %s137
      %s141 = sphi 0, %s140
      %s157 = sphi 0, %s141
    $region4: #{tpu_custom_call.1} parent=1 // loop_header_branch
      %20 = sbr.rel (%p18) target = $region8
    $region5: #{tpu_custom_call.1} parent=1 // loop_body
      %s22 = ssub.s32 %s17, 1
      %s23 = ssub.s32 %s17, 2
      %s24 = sadd.s32 %s17, 1
      %s25 = ssub.s32 %s17, %s24
      %p26 = scmp.eq.s32.totalorder %s25, 0
      %s28 = sadd.s32 %s27, 1
      %s29 = scalar_select %p26, %s27, %s28
      %p32 = pneg %p26
      %p33 = scmp.eq.s32.totalorder %s17, 1
      %p34 = por %p32, %p33
      %p35 = scmp.ne.s32.totalorder %s27, %s30
      %p36 = scmp.eq.s32.totalorder %s17, 0
      %p37 = por %p35, %p36
      %p38 = scmp.ne.s32.totalorder %s27, %s30
      %p39 = scmp.eq.s32.totalorder %s22, 1
      %p40 = por %p38, %p39
      %p41 = scmp.ne.s32.totalorder %s30, %s31
      %p42 = scmp.eq.s32.totalorder %s22, 0
      %p43 = por %p41, %p42
      %p44 = scmp.ne.s32.totalorder %s30, %s31
      %p45 = scmp.eq.s32.totalorder %s23, 1
      %p46 = por %p44, %p45
      %p48 = scmp.ne.s32.totalorder %s31, %s47
      %p49 = scmp.eq.s32.totalorder %s23, 0
      %p50 = por %p48, %p49
      %s52 = sadd.s32 %s51, 1
      %p55 = scmp.eq.s32.totalorder %s17, 1
      %p56 = scmp.ne.s32.totalorder %s51, %s53
      %p57 = scmp.eq.s32.totalorder %s17, 0
      %p58 = por %p56, %p57
      %p59 = scmp.ne.s32.totalorder %s51, %s53
      %p60 = scmp.eq.s32.totalorder %s22, 1
      %p61 = por %p59, %p60
      %p62 = scmp.ne.s32.totalorder %s53, %s54
      %p63 = scmp.eq.s32.totalorder %s22, 0
      %p64 = por %p62, %p63
      %p65 = scmp.ne.s32.totalorder %s53, %s54
      %p66 = scmp.eq.s32.totalorder %s23, 1
      %p67 = por %p65, %p66
      %p69 = scmp.ne.s32.totalorder %s54, %s68
      %p70 = scmp.eq.s32.totalorder %s23, 0
      %p71 = por %p69, %p70
      %s73 = sadd.s32 %s72, 1
      %p76 = scmp.eq.s32.totalorder %s17, 1
      %p77 = scmp.ne.s32.totalorder %s72, %s74
      %p78 = scmp.eq.s32.totalorder %s17, 0
      %p79 = por %p77, %p78
      %p80 = scmp.ne.s32.totalorder %s72, %s74
      %p81 = scmp.eq.s32.totalorder %s22, 1
      %p82 = por %p80, %p81
      %p83 = scmp.ne.s32.totalorder %s74, %s75
      %p84 = scmp.eq.s32.totalorder %s22, 0
      %p85 = por %p83, %p84
      %p86 = scmp.ne.s32.totalorder %s74, %s75
      %p87 = scmp.eq.s32.totalorder %s23, 1
      %p88 = por %p86, %p87
      %p90 = scmp.ne.s32.totalorder %s75, %s89
      %p91 = scmp.eq.s32.totalorder %s23, 0
      %p92 = por %p90, %p91
      %s94 = sadd.s32 %s93, 1
      %p97 = scmp.eq.s32.totalorder %s17, 1
      %p98 = scmp.ne.s32.totalorder %s93, %s95
      %p99 = scmp.eq.s32.totalorder %s17, 0
      %p100 = por %p98, %p99
      %p101 = scmp.ne.s32.totalorder %s93, %s95
      %p102 = scmp.eq.s32.totalorder %s22, 1
      %p103 = por %p101, %p102
      %p104 = scmp.ne.s32.totalorder %s95, %s96
      %p105 = scmp.eq.s32.totalorder %s22, 0
      %p106 = por %p104, %p105
      %p107 = scmp.ne.s32.totalorder %s95, %s96
      %p108 = scmp.eq.s32.totalorder %s23, 1
      %p109 = por %p107, %p108
      %p111 = scmp.ne.s32.totalorder %s96, %s110
      %p112 = scmp.eq.s32.totalorder %s23, 0
      %p113 = por %p111, %p112
      %s115 = sadd.s32 %s114, 1
      %p118 = scmp.eq.s32.totalorder %s17, 1
      %p119 = scmp.ne.s32.totalorder %s114, %s116
      %p120 = scmp.eq.s32.totalorder %s17, 0
      %p121 = por %p119, %p120
      %p122 = scmp.ne.s32.totalorder %s114, %s116
      %p123 = scmp.eq.s32.totalorder %s22, 1
      %p124 = por %p122, %p123
      %p125 = scmp.ne.s32.totalorder %s116, %s117
      %p126 = scmp.eq.s32.totalorder %s22, 0
      %p127 = por %p125, %p126
      %p128 = scmp.ne.s32.totalorder %s116, %s117
      %p129 = scmp.eq.s32.totalorder %s23, 1
      %p130 = por %p128, %p129
      %p132 = scmp.ne.s32.totalorder %s117, %s131
      %p133 = scmp.eq.s32.totalorder %s23, 0
      %p134 = por %p132, %p133
      %s135 = ssub.s32 %s17, %s24
      %p136 = scmp.eq.s32.totalorder %s135, 0
      %s138 = sadd.s32 %s137, 1
      %s139 = scalar_select %p136, %s137, %s138
      %p142 = pneg %p136
      %p143 = scmp.eq.s32.totalorder %s17, 1
      %p144 = por %p142, %p143
      %p145 = scmp.ne.s32.totalorder %s137, %s140
      %p146 = scmp.eq.s32.totalorder %s17, 0
      %p147 = por %p145, %p146
      %p148 = scmp.ne.s32.totalorder %s137, %s140
      %p149 = scmp.eq.s32.totalorder %s22, 1
      %p150 = por %p148, %p149
      %p151 = scmp.ne.s32.totalorder %s140, %s141
      %p152 = scmp.eq.s32.totalorder %s22, 0
      %p153 = por %p151, %p152
      %p154 = scmp.ne.s32.totalorder %s140, %s141
      %p155 = scmp.eq.s32.totalorder %s23, 1
      %p156 = por %p154, %p155
      %p158 = scmp.ne.s32.totalorder %s141, %s157
      %p159 = scmp.eq.s32.totalorder %s23, 0
      %p160 = por %p158, %p159
      %p161 = scmp.le.s32.totalorder 1, %s17
      %p162 = scmp.lt.s32.totalorder %s17, 3
      %p163 = pnand %p161, %p162
      %p164 = pneg %p163
      // Predicated region
      $region9: #{tpu_custom_call.1} parent=5 // pred_check
        _
      $region10: #{tpu_custom_call.1} parent=5 // pred_check_branch
        %166 = sbr.rel (%p163) target = $region12
      $region11: #{tpu_custom_call.1} parent=5 // pred_region
        %s167 = ssub.s32 %s17, 1
        // Predicated region
        $region13: #{tpu_custom_call.1} parent=11 // pred_check
          %p168 = pneg %p64
        $region14: #{tpu_custom_call.1} parent=11 // pred_check_branch
          %170 = sbr.rel (%p168) target = $region16
        $region15: #{tpu_custom_call.1} parent=11 // pred_region
          _
        $region16: #{tpu_custom_call.1} parent=11 // pred_fallthru
          _
        // Predicated region
        $region17: #{tpu_custom_call.1} parent=11 // pred_check
          %p171 = pneg %p85
        $region18: #{tpu_custom_call.1} parent=11 // pred_check_branch
          %173 = sbr.rel (%p171) target = $region20
        $region19: #{tpu_custom_call.1} parent=11 // pred_region
          _
        $region20: #{tpu_custom_call.1} parent=11 // pred_fallthru
          _
        // Predicated region
        $region21: #{tpu_custom_call.1} parent=11 // pred_check
          %p174 = pneg %p106
        $region22: #{tpu_custom_call.1} parent=11 // pred_check_branch
          %176 = sbr.rel (%p174) target = $region24
        $region23: #{tpu_custom_call.1} parent=11 // pred_region
          _
        $region24: #{tpu_custom_call.1} parent=11 // pred_fallthru
          _
        // Predicated region
        $region25: #{tpu_custom_call.1} parent=11 // pred_check
          %p177 = pneg %p127
        $region26: #{tpu_custom_call.1} parent=11 // pred_check_branch
          %179 = sbr.rel (%p177) target = $region28
        $region27: #{tpu_custom_call.1} parent=11 // pred_region
          _
        $region28: #{tpu_custom_call.1} parent=11 // pred_fallthru
          _
      $region12: #{tpu_custom_call.1} parent=5 // pred_fallthru
        _
      %p180 = scmp.lt.s32.totalorder %s17, 2
      // Predicated region
      $region29: #{tpu_custom_call.1} parent=5 // pred_check
        %p181 = pneg %p180
      $region30: #{tpu_custom_call.1} parent=5 // pred_check_branch
        %183 = sbr.rel (%p181) target = $region32
      $region31: #{tpu_custom_call.1} parent=5 // pred_region
        // Predicated region
        $region33: #{tpu_custom_call.1} parent=31 // pred_check
          %p184 = pneg %p37
        $region34: #{tpu_custom_call.1} parent=31 // pred_check_branch
          %186 = sbr.rel (%p184) target = $region36
        $region35: #{tpu_custom_call.1} parent=31 // pred_region
          %s187 = sand.u32 %s27, 1
          %s188 = scalar_lea.sflag [#allocation3], %s187
          %s189 = sand.u32 %s27, 1
          %s190 = smul.addr %s189, 8
          %s191 = scalar_lea.vmem [#allocation2], %s190
          %s193 = ssub.s32 128, 128
          %194 = vsyncadd %s188, %s193
          %s195 = smul.addr %s17, 2
          %s196 = smul.addr %s195, 64
          %s197 = scalar_lea.hbm %s0, %s196
          %s199 = sshll.u32 %s191, 4
          %s200 = int_to_ptr.vmem [resolvable:$true] %s199
          %202 = dma.hbm_to_vmem [thread:$0]  %s197, 128, %s200, %s188
        $region36: #{tpu_custom_call.1} parent=31 // pred_fallthru
          _
      $region32: #{tpu_custom_call.1} parent=5 // pred_fallthru
        _
      %p203 = scmp.le.s32.totalorder 1, %s17
      %p204 = scmp.lt.s32.totalorder %s17, 3
      %p205 = pnand %p203, %p204
      %p206 = pneg %p205
      // Predicated region
      $region37: #{tpu_custom_call.1} parent=5 // pred_check
        _
      $region38: #{tpu_custom_call.1} parent=5 // pred_check_branch
        %208 = sbr.rel (%p205) target = $region40
      $region39: #{tpu_custom_call.1} parent=5 // pred_region
        %s209 = ssub.s32 %s17, 1
        %s210 = sand.u32 %s30, 1
        %s211 = scalar_lea.sflag [#allocation3], %s210
        %s212 = sand.u32 %s30, 1
        %s213 = smul.addr %s212, 8
        %s214 = scalar_lea.vmem [#allocation2], %s213
        // Predicated region
        $region41: #{tpu_custom_call.1} parent=39 // pred_check
          %p215 = pneg %p43
        $region42: #{tpu_custom_call.1} parent=39 // pred_check_branch
          %217 = sbr.rel (%p215) target = $region44
        $region43: #{tpu_custom_call.1} parent=39 // pred_region
          %218 = dma.done %s211, 128
        $region44: #{tpu_custom_call.1} parent=39 // pred_fallthru
          _
        %s219 = sand.u32 %s30, 1
        %s220 = scalar_lea.sflag [#allocation3], %s219
        %s221 = sand.u32 %s30, 1
        %s222 = smul.addr %s221, 8
        %s223 = scalar_lea.vmem [#allocation2], %s222
        %p224 = pneg %p43
        %p225 = pneg %p40
        %p226 = pneg %p64
        %p227 = pneg %p61
        %p228 = pneg %p85
        %p229 = pneg %p82
        %p230 = pneg %p106
        %p231 = pneg %p103
        %p232 = pneg %p127
        %p233 = pneg %p124
        %p234 = pneg %p153
        %p235 = pneg %p150
        %s236 = sand.u32 %s140, 1
        %s237 = scalar_lea.sflag [#allocation4], %s236
        %s238 = sand.u32 %s140, 1
        %s239 = smul.addr %s238, 8
        %s240 = scalar_lea.vmem [#allocation5], %s239
        %v242 = vlaneseq
        %v243 = vand.u32 %v242, 127
        %v244 = vadd.s32 %v243, 128
        %vm245 = vcmp.lt.s32.totalorder %v243, 0
        %v246 = vsub.s32 0, %v243
        %v247 = vsel %vm245, %v246, %v243
        %v248 = vshrl.u32 %v247, 4
        %v249 = vand.u32 %v247, 15
        %v250 = vsub.s32 0, %v249
        %v251 = vsel %vm245, %v250, %v249
        %vm252 = vcmp.lt.s32.totalorder %v244, 0
        %v253 = vsub.s32 0, %v244
        %v254 = vsel %vm252, %v253, %v244
        %v255 = vshrl.u32 %v254, 4
        %v256 = vand.u32 %v254, 15
        %v257 = vsub.s32 0, %v256
        %v258 = vsel %vm252, %v257, %v256
        %vm259 = vcmp.ne.s32.totalorder %v251, 0
        %vm260 = vcmp.ne.s32.totalorder %v258, 0
        %vm261 = vcmp.lt.s32.totalorder %v251, 0
        %vm262 = vcmp.lt.s32.totalorder %v258, 0
        %vm263 = vmand %vm261, %vm259
        %vm264 = vmand %vm262, %vm260
        %v265 = vadd.s32 %v251, 16
        %v266 = vadd.s32 %v258, 16
        %v267 = vsel %vm263, %v265, %v251
        %v268 = vsel %vm264, %v266, %v258
        %vm269 = vcmp.gt.s32.totalorder %v267, 0
        %vm270 = vcmp.gt.s32.totalorder %v268, 0
        %v271 = vsel %vm269, 1, 0
        %v272 = vsel %vm270, 1, 0
        %v273 = vcvt.s32.f32 %v271
        %v274 = vcvt.s32.f32 %v272
        %vm275 = vcmp.lt.s32.totalorder %v267, 15
        %vm276 = vcmp.lt.s32.totalorder %v268, 15
        %v277 = vsel %vm275, 1, 0
        %v278 = vsel %vm276, 1, 0
        %v279 = vcvt.s32.f32 %v277
        %v280 = vcvt.s32.f32 %v278
        %v281 = vld [vmem:[%s214] sm:$0xff]
        %v283 = vcombine.high %v281, %v281
        %284 = vrot.lane.b32.xlu0 %v281, 17
        %v285 = vpop.permute.xlu0 %284
        %286 = vrot.lane.b32.xlu0 %v283, 17
        %v287 = vpop.permute.xlu0 %286
        %vm288 = vcmask 138240
        %v289 = vsel %vm288, %v285, %v287
        %v293 = vsel %vm288, 0.0, %v285
        %v294 = vsel %vm288, %v287, 0.0
        %v295 = vmul.f32 %v293, %v273
        %v296 = vmul.f32 %v289, %v274
        %v297 = vpack.c.bf16 %v295, %v295
        %v298 = vpack.c.bf16 %v296, %v296
        %v299 = vpack.c.bf16 %v293, %v293
        %v300 = vpack.c.bf16 %v289, %v289
        %v301 = vpack.c.bf16 %v294, %v294
        %304 = vrot.lane.b32.xlu0 %v279, 2
        %v305 = vpop.permute.xlu0 %304
        %306 = vrot.lane.b32.xlu0 %v280, 2
        %v307 = vpop.permute.xlu0 %306
        %vm308 = vcmask 15360
        %v309 = vsel %vm308, %v305, %v307
        %v313 = vmul.f32 %v293, %v305
        %v314 = vmul.f32 %v289, %v309
        %v315 = vmul.f32 %v294, %v307
        %v316 = vpack.c.bf16 %v313, %v313
        %v317 = vpack.c.bf16 %v314, %v314
        %v318 = vpack.c.bf16 %v315, %v315
        %321 = vrot.lane.b32.xlu0 %v273, 16
        %v322 = vpop.permute.xlu0 %321
        %323 = vrot.lane.b32.xlu0 %v274, 16
        %v324 = vpop.permute.xlu0 %323
        %vm325 = vcmask 130048
        %v326 = vsel %vm325, %v322, %v324
        %v330 = vmul.f32 %v293, %v322
        %v331 = vmul.f32 %v289, %v326
        %v332 = vmul.f32 %v294, %v324
        %v333 = vpack.c.bf16 %v330, %v330
        %v334 = vpack.c.bf16 %v331, %v331
        %v335 = vpack.c.bf16 %v332, %v332
        %336 = vrot.lane.b32.xlu0 %v279, 18
        %v337 = vpop.permute.xlu0 %336
        %338 = vrot.lane.b32.xlu0 %v280, 18
        %v339 = vpop.permute.xlu0 %338
        %vm340 = vcmask 146432
        %v341 = vsel %vm340, %v337, %v339
        %v345 = vmul.f32 %v293, %v337
        %v346 = vmul.f32 %v289, %v341
        %v347 = vmul.f32 %v294, %v339
        %v348 = vpack.c.bf16 %v345, %v345
        %v349 = vpack.c.bf16 %v346, %v346
        %v350 = vpack.c.bf16 %v347, %v347
        %351 = vrot.lane.b32.xlu0 %v273, 32
        %v352 = vpop.permute.xlu0 %351
        %353 = vrot.lane.b32.xlu0 %v274, 32
        %v354 = vpop.permute.xlu0 %353
        %vm355 = vcmask 261120
        %v356 = vsel %vm355, %v352, %v354
        %v360 = vmul.f32 %v293, %v352
        %v361 = vmul.f32 %v289, %v356
        %v362 = vmul.f32 %v294, %v354
        %v363 = vpack.c.bf16 %v360, %v360
        %v364 = vpack.c.bf16 %v361, %v361
        %v365 = vpack.c.bf16 %v362, %v362
        %366 = vrot.lane.b32.xlu0 %v279, 34
        %v367 = vpop.permute.xlu0 %366
        %368 = vrot.lane.b32.xlu0 %v280, 34
        %v369 = vpop.permute.xlu0 %368
        %vm370 = vcmask 277504
        %v371 = vsel %vm370, %v367, %v369
        %v375 = vmul.f32 %v293, %v367
        %v376 = vmul.f32 %v289, %v371
        %v377 = vmul.f32 %v294, %v369
        %v378 = vpack.c.bf16 %v375, %v375
        %v379 = vpack.c.bf16 %v376, %v376
        %v380 = vpack.c.bf16 %v377, %v377
        %v384 = vrot.slane %v299, 6
        %v385 = vrot.slane %v300, 6
        %v386 = vrot.slane %v301, 6
        %387 = vrot.lane.b32.xlu0 %v384, 127
        %v388 = vpop.permute.xlu0 %387
        %389 = vrot.lane.b32.xlu0 %v385, 127
        %v390 = vpop.permute.xlu0 %389
        %391 = vrot.lane.b32.xlu0 %v386, 127
        %v392 = vpop.permute.xlu0 %391
        %vm393 = vcmask 1039360
        %v394 = vsel %vm393, %v388, %v390
        %v395 = vsel %vm393, %v390, %v392
        %v399 = vrot.slane %v316, 4
        %v400 = vrot.slane %v317, 4
        %v401 = vrot.slane %v318, 4
        %402 = vrot.lane.b32.xlu0 %v399, 126
        %v403 = vpop.permute.xlu0 %402
        %404 = vrot.lane.b32.xlu0 %v400, 126
        %v405 = vpop.permute.xlu0 %404
        %406 = vrot.lane.b32.xlu0 %v401, 126
        %v407 = vpop.permute.xlu0 %406
        %vm408 = vcmask 1031168
        %v409 = vsel %vm408, %v403, %v405
        %v410 = vsel %vm408, %v405, %v407
        %v414 = vrot.slane %v333, 2
        %v415 = vrot.slane %v334, 2
        %v416 = vrot.slane %v335, 2
        %417 = vrot.lane.b32.xlu0 %v414, 112
        %v418 = vpop.permute.xlu0 %417
        %419 = vrot.lane.b32.xlu0 %v415, 112
        %v420 = vpop.permute.xlu0 %419
        %421 = vrot.lane.b32.xlu0 %v416, 112
        %v422 = vpop.permute.xlu0 %421
        %vm423 = vcmask 916480
        %v424 = vsel %vm423, %v418, %v420
        %v425 = vsel %vm423, %v420, %v422
        %426 = vrot.lane.b32.xlu0 %v299, 111
        %v427 = vpop.permute.xlu0 %426
        %428 = vrot.lane.b32.xlu0 %v300, 111
        %v429 = vpop.permute.xlu0 %428
        %430 = vrot.lane.b32.xlu0 %v301, 111
        %v431 = vpop.permute.xlu0 %430
        %vm432 = vcmask 908288
        %v433 = vsel %vm432, %v427, %v429
        %v434 = vsel %vm432, %v429, %v431
        %v438 = vrot.slane %v348, 6
        %v439 = vrot.slane %v349, 6
        %v440 = vrot.slane %v350, 6
        %441 = vrot.lane.b32.xlu0 %v438, 110
        %v442 = vpop.permute.xlu0 %441
        %443 = vrot.lane.b32.xlu0 %v439, 110
        %v444 = vpop.permute.xlu0 %443
        %445 = vrot.lane.b32.xlu0 %v440, 110
        %v446 = vpop.permute.xlu0 %445
        %vm447 = vcmask 900096
        %v448 = vsel %vm447, %v442, %v444
        %v449 = vsel %vm447, %v444, %v446
        %v453 = vrot.slane %v363, 4
        %v454 = vrot.slane %v364, 4
        %v455 = vrot.slane %v365, 4
        %456 = vrot.lane.b32.xlu0 %v453, 96
        %v457 = vpop.permute.xlu0 %456
        %458 = vrot.lane.b32.xlu0 %v454, 96
        %v459 = vpop.permute.xlu0 %458
        %460 = vrot.lane.b32.xlu0 %v455, 96
        %v461 = vpop.permute.xlu0 %460
        %vm462 = vcmask 785408
        %v463 = vsel %vm462, %v457, %v459
        %v464 = vsel %vm462, %v459, %v461
        %v465 = vrot.slane %v299, 2
        %v466 = vrot.slane %v300, 2
        %v467 = vrot.slane %v301, 2
        %468 = vrot.lane.b32.xlu0 %v465, 95
        %v469 = vpop.permute.xlu0 %468
        %470 = vrot.lane.b32.xlu0 %v466, 95
        %v471 = vpop.permute.xlu0 %470
        %472 = vrot.lane.b32.xlu0 %v467, 95
        %v473 = vpop.permute.xlu0 %472
        %vm474 = vcmask 777216
        %v475 = vsel %vm474, %v469, %v471
        %v476 = vsel %vm474, %v471, %v473
        %480 = vrot.lane.b32.xlu0 %v378, 94
        %v481 = vpop.permute.xlu0 %480
        %482 = vrot.lane.b32.xlu0 %v379, 94
        %v483 = vpop.permute.xlu0 %482
        %484 = vrot.lane.b32.xlu0 %v380, 94
        %v485 = vpop.permute.xlu0 %484
        %vm486 = vcmask 769024
        %v487 = vsel %vm486, %v481, %v483
        %v488 = vsel %vm486, %v483, %v485
        %vm489 = vcmask 1041408
        %v492 = vsel %vm489, %v297, %v394
        %v495 = vsel %vm489, %v298, %v395
        %vm496 = vcmask 1043456
        %v498 = vsel %vm496, %v492, %v409
        %v500 = vsel %vm496, %v495, %v410
        %vm501 = vcmask 1045504
        %v503 = vsel %vm501, %v498, %v424
        %v506 = vsel %vm501, %v500, %v425
        %v510 = vsel %vm489, %v433, %v448
        %v513 = vsel %vm489, %v434, %v449
        %v515 = vsel %vm496, %v510, %v463
        %v517 = vsel %vm496, %v513, %v464
        %v519 = vsel %vm501, %v515, %v475
        %v522 = vsel %vm501, %v517, %v476
        %v524 = vld [vmem:[%s1] sm:$0x3]
        %v525 = vld [vmem:[%s2] sm:$0xf]
        %527 = vset.pattern.permute.xlu0 0
        %528 = vperm.xlu0 %527, %v525
        %v529 = vpop.permute.xlu0 %528
        %vm531 = vcmask 293888
        %v533 = vsel %vm531, %v524, 0
        %v536 = vsel %vm489, %v487, 0
        %v539 = vsel %vm489, %v488, 0
        %541 = vmatprep.subr.bf16.mxu0 %v506
        %542 = vmatpush1.bf16.msra.mxu0 %v503
        %543 = vmatprep.subr.bf16.mxu0 %v522
        %544 = vmatpush1.bf16.msra.mxu0 %v519
        %545 = vmatprep.subr.bf16.mxu0 %v539
        %546 = vmatpush1.bf16.msra.mxu0 %v536
        %547 = vmatprep.subr.bf16.mxu0 0
        %548 = vmatpush1.bf16.msra.mxu0 0
        %549 = vmatprep.subr.bf16.mxu0 0
        %550 = vmatpush1.bf16.msra.mxu0 0
        %551 = vmatprep.subr.bf16.mxu0 0
        %552 = vmatpush1.bf16.msra.mxu0 0
        %553 = vmatprep.subr.bf16.mxu0 0
        %554 = vmatpush1.bf16.msra.mxu0 0
        %555 = vmatprep.subr.bf16.mxu0 0
        %556 = vmatpush1.bf16.msra.mxu0 0
        %557 = vmatprep.subr.bf16.mxu0 0
        %558 = vmatpush1.bf16.msra.mxu0 0
        %559 = vmatprep.subr.bf16.mxu0 0
        %560 = vmatpush1.bf16.msra.mxu0 0
        %561 = vmatprep.subr.bf16.mxu0 0
        %562 = vmatpush1.bf16.msra.mxu0 0
        %563 = vmatprep.subr.bf16.mxu0 0
        %564 = vmatpush1.bf16.msra.mxu0 0
        %565 = vmatprep.subr.bf16.mxu0 0
        %566 = vmatpush1.bf16.msra.mxu0 0
        %567 = vmatprep.subr.bf16.mxu0 0
        %568 = vmatpush1.bf16.msra.mxu0 0
        %569 = vmatprep.subr.bf16.mxu0 0
        %570 = vmatpush1.bf16.msra.mxu0 0
        %571 = vmatprep.subr.bf16.mxu0 0
        %572 = vmatpush1.bf16.msra.mxu0 0
        %573 = vmatprep.mubr.bf16.mxu0 0
        %574 = vmatmul.mubr.bf16.gmra.mrb[0].mxu0 %v533
        %v575 = vpop.f32.mrb[0].mxu0
        %v576 = vadd.f32 %v529, %v575
        %v577 = vpop.f32.mrb[0].mxu0
        %v578 = vadd.f32 %v529, %v577
        %v579 = vpop.f32.mrb[0].mxu0
        %v580 = vpop.f32.mrb[0].mxu0
        %581 = vdwg.mxu0
        %v582 = vmax.f32 %v576, 0.0
        %v583 = vmax.f32 %v578, 0.0
        %586 = vrot.lane.b32.xlu0 %v582, 17
        %v587 = vpop.permute.xlu0 %586
        %588 = vrot.lane.b32.xlu0 %v583, 17
        %v589 = vpop.permute.xlu0 %588
        %v590 = vsel %vm288, %v587, %v589
        %v594 = vsel %vm288, 0.0, %v587
        %v595 = vsel %vm288, %v589, 0.0
        %v596 = vmul.f32 %v594, %v273
        %v597 = vmul.f32 %v590, %v274
        %v598 = vpack.c.bf16 %v596, %v596
        %v599 = vpack.c.bf16 %v597, %v597
        %v600 = vpack.c.bf16 %v594, %v594
        %v601 = vpack.c.bf16 %v590, %v590
        %v602 = vpack.c.bf16 %v595, %v595
        %v603 = vmul.f32 %v594, %v305
        %v604 = vmul.f32 %v590, %v309
        %v605 = vmul.f32 %v595, %v307
        %v606 = vpack.c.bf16 %v603, %v603
        %v607 = vpack.c.bf16 %v604, %v604
        %v608 = vpack.c.bf16 %v605, %v605
        %v609 = vmul.f32 %v594, %v322
        %v610 = vmul.f32 %v590, %v326
        %v611 = vmul.f32 %v595, %v324
        %v612 = vpack.c.bf16 %v609, %v609
        %v613 = vpack.c.bf16 %v610, %v610
        %v614 = vpack.c.bf16 %v611, %v611
        %v615 = vmul.f32 %v594, %v337
        %v616 = vmul.f32 %v590, %v341
        %v617 = vmul.f32 %v595, %v339
        %v618 = vpack.c.bf16 %v615, %v615
        %v619 = vpack.c.bf16 %v616, %v616
        %v620 = vpack.c.bf16 %v617, %v617
        %v621 = vmul.f32 %v594, %v352
        %v622 = vmul.f32 %v590, %v356
        %v623 = vmul.f32 %v595, %v354
        %v624 = vpack.c.bf16 %v621, %v621
        %v625 = vpack.c.bf16 %v622, %v622
        %v626 = vpack.c.bf16 %v623, %v623
        %v627 = vmul.f32 %v594, %v367
        %v628 = vmul.f32 %v590, %v371
        %v629 = vmul.f32 %v595, %v369
        %v630 = vpack.c.bf16 %v627, %v627
        %v631 = vpack.c.bf16 %v628, %v628
        %v632 = vpack.c.bf16 %v629, %v629
        %v636 = vrot.slane %v600, 6
        %v637 = vrot.slane %v601, 6
        %v638 = vrot.slane %v602, 6
        %639 = vrot.lane.b32.xlu0 %v636, 127
        %v640 = vpop.permute.xlu0 %639
        %641 = vrot.lane.b32.xlu0 %v637, 127
        %v642 = vpop.permute.xlu0 %641
        %643 = vrot.lane.b32.xlu0 %v638, 127
        %v644 = vpop.permute.xlu0 %643
        %v645 = vsel %vm393, %v640, %v642
        %v646 = vsel %vm393, %v642, %v644
        %v650 = vrot.slane %v606, 4
        %v651 = vrot.slane %v607, 4
        %v652 = vrot.slane %v608, 4
        %653 = vrot.lane.b32.xlu0 %v650, 126
        %v654 = vpop.permute.xlu0 %653
        %655 = vrot.lane.b32.xlu0 %v651, 126
        %v656 = vpop.permute.xlu0 %655
        %657 = vrot.lane.b32.xlu0 %v652, 126
        %v658 = vpop.permute.xlu0 %657
        %v659 = vsel %vm408, %v654, %v656
        %v660 = vsel %vm408, %v656, %v658
        %v664 = vrot.slane %v612, 2
        %v665 = vrot.slane %v613, 2
        %v666 = vrot.slane %v614, 2
        %667 = vrot.lane.b32.xlu0 %v664, 112
        %v668 = vpop.permute.xlu0 %667
        %669 = vrot.lane.b32.xlu0 %v665, 112
        %v670 = vpop.permute.xlu0 %669
        %671 = vrot.lane.b32.xlu0 %v666, 112
        %v672 = vpop.permute.xlu0 %671
        %v673 = vsel %vm423, %v668, %v670
        %v674 = vsel %vm423, %v670, %v672
        %675 = vrot.lane.b32.xlu0 %v600, 111
        %v676 = vpop.permute.xlu0 %675
        %677 = vrot.lane.b32.xlu0 %v601, 111
        %v678 = vpop.permute.xlu0 %677
        %679 = vrot.lane.b32.xlu0 %v602, 111
        %v680 = vpop.permute.xlu0 %679
        %v681 = vsel %vm432, %v676, %v678
        %v682 = vsel %vm432, %v678, %v680
        %v686 = vrot.slane %v618, 6
        %v687 = vrot.slane %v619, 6
        %v688 = vrot.slane %v620, 6
        %689 = vrot.lane.b32.xlu0 %v686, 110
        %v690 = vpop.permute.xlu0 %689
        %691 = vrot.lane.b32.xlu0 %v687, 110
        %v692 = vpop.permute.xlu0 %691
        %693 = vrot.lane.b32.xlu0 %v688, 110
        %v694 = vpop.permute.xlu0 %693
        %v695 = vsel %vm447, %v690, %v692
        %v696 = vsel %vm447, %v692, %v694
        %v700 = vrot.slane %v624, 4
        %v701 = vrot.slane %v625, 4
        %v702 = vrot.slane %v626, 4
        %703 = vrot.lane.b32.xlu0 %v700, 96
        %v704 = vpop.permute.xlu0 %703
        %705 = vrot.lane.b32.xlu0 %v701, 96
        %v706 = vpop.permute.xlu0 %705
        %707 = vrot.lane.b32.xlu0 %v702, 96
        %v708 = vpop.permute.xlu0 %707
        %v709 = vsel %vm462, %v704, %v706
        %v710 = vsel %vm462, %v706, %v708
        %v711 = vrot.slane %v600, 2
        %v712 = vrot.slane %v601, 2
        %v713 = vrot.slane %v602, 2
        %714 = vrot.lane.b32.xlu0 %v711, 95
        %v715 = vpop.permute.xlu0 %714
        %716 = vrot.lane.b32.xlu0 %v712, 95
        %v717 = vpop.permute.xlu0 %716
        %718 = vrot.lane.b32.xlu0 %v713, 95
        %v719 = vpop.permute.xlu0 %718
        %v720 = vsel %vm474, %v715, %v717
        %v721 = vsel %vm474, %v717, %v719
        %725 = vrot.lane.b32.xlu0 %v630, 94
        %v726 = vpop.permute.xlu0 %725
        %727 = vrot.lane.b32.xlu0 %v631, 94
        %v728 = vpop.permute.xlu0 %727
        %729 = vrot.lane.b32.xlu0 %v632, 94
        %v730 = vpop.permute.xlu0 %729
        %v731 = vsel %vm486, %v726, %v728
        %v732 = vsel %vm486, %v728, %v730
        %v735 = vsel %vm489, %v598, %v645
        %v738 = vsel %vm489, %v599, %v646
        %v740 = vsel %vm496, %v735, %v659
        %v742 = vsel %vm496, %v738, %v660
        %v744 = vsel %vm501, %v740, %v673
        %v747 = vsel %vm501, %v742, %v674
        %v751 = vsel %vm489, %v681, %v695
        %v754 = vsel %vm489, %v682, %v696
        %v756 = vsel %vm496, %v751, %v709
        %v758 = vsel %vm496, %v754, %v710
        %v760 = vsel %vm501, %v756, %v720
        %v763 = vsel %vm501, %v758, %v721
        %v765 = vld [vmem:[%s3] sm:$0x3]
        %v766 = vld [vmem:[%s4] sm:$0xf]
        %768 = vset.pattern.permute.xlu0 0
        %769 = vperm.xlu0 %768, %v766
        %v770 = vpop.permute.xlu0 %769
        %v773 = vsel %vm531, %v765, 0
        %v776 = vsel %vm489, %v731, 0
        %v779 = vsel %vm489, %v732, 0
        %781 = vmatprep.subr.bf16.mxu0 %v747
        %782 = vmatpush1.bf16.msra.mxu0 %v744
        %783 = vmatprep.subr.bf16.mxu0 %v763
        %784 = vmatpush1.bf16.msra.mxu0 %v760
        %785 = vmatprep.subr.bf16.mxu0 %v779
        %786 = vmatpush1.bf16.msra.mxu0 %v776
        %787 = vmatprep.subr.bf16.mxu0 0
        %788 = vmatpush1.bf16.msra.mxu0 0
        %789 = vmatprep.subr.bf16.mxu0 0
        %790 = vmatpush1.bf16.msra.mxu0 0
        %791 = vmatprep.subr.bf16.mxu0 0
        %792 = vmatpush1.bf16.msra.mxu0 0
        %793 = vmatprep.subr.bf16.mxu0 0
        %794 = vmatpush1.bf16.msra.mxu0 0
        %795 = vmatprep.subr.bf16.mxu0 0
        %796 = vmatpush1.bf16.msra.mxu0 0
        %797 = vmatprep.subr.bf16.mxu0 0
        %798 = vmatpush1.bf16.msra.mxu0 0
        %799 = vmatprep.subr.bf16.mxu0 0
        %800 = vmatpush1.bf16.msra.mxu0 0
        %801 = vmatprep.subr.bf16.mxu0 0
        %802 = vmatpush1.bf16.msra.mxu0 0
        %803 = vmatprep.subr.bf16.mxu0 0
        %804 = vmatpush1.bf16.msra.mxu0 0
        %805 = vmatprep.subr.bf16.mxu0 0
        %806 = vmatpush1.bf16.msra.mxu0 0
        %807 = vmatprep.subr.bf16.mxu0 0
        %808 = vmatpush1.bf16.msra.mxu0 0
        %809 = vmatprep.subr.bf16.mxu0 0
        %810 = vmatpush1.bf16.msra.mxu0 0
        %811 = vmatprep.subr.bf16.mxu0 0
        %812 = vmatpush1.bf16.msra.mxu0 0
        %813 = vmatprep.mubr.bf16.mxu0 0
        %814 = vmatmul.mubr.bf16.gmra.mrb[0].mxu0 %v773
        %v815 = vpop.f32.mrb[0].mxu0
        %v816 = vadd.f32 %v770, %v815
        %v817 = vpop.f32.mrb[0].mxu0
        %v818 = vadd.f32 %v770, %v817
        %v819 = vpop.f32.mrb[0].mxu0
        %v820 = vpop.f32.mrb[0].mxu0
        %821 = vdwg.mxu0
        %v823 = vadd.f32 %v816, %v281
        %v824 = vadd.f32 %v818, %v283
        %v825 = vmax.f32 %v823, 0.0
        %v826 = vmax.f32 %v824, 0.0
        %v829 = vcombine.low %v825, %v826
        %831 = vst [vmem:[%s240] sm:$0xff] %v829
        %s832 = sand.u32 %s140, 1
        %s833 = scalar_lea.sflag [#allocation4], %s832
        %s834 = sand.u32 %s140, 1
        %s835 = smul.addr %s834, 8
        %s836 = scalar_lea.vmem [#allocation5], %s835
        // Predicated region
        $region45: #{tpu_custom_call.1} parent=39 // pred_check
          %p837 = pneg %p150
        $region46: #{tpu_custom_call.1} parent=39 // pred_check_branch
          %839 = sbr.rel (%p837) target = $region48
        $region47: #{tpu_custom_call.1} parent=39 // pred_region
          %s841 = ssub.s32 128, 128
          %842 = vsyncadd %s833, %s841
          %s843 = smul.addr %s22, 2
          %s844 = smul.addr %s843, 64
          %s845 = scalar_lea.hbm %s5, %s844
          %s847 = sshll.u32 %s836, 4
          %s848 = int_to_ptr.vmem [resolvable:$true] %s847
          %850 = dma.vmem_to_hbm [thread:$0]  %s848, 128, %s845, %s833
        $region48: #{tpu_custom_call.1} parent=39 // pred_fallthru
          _
      $region40: #{tpu_custom_call.1} parent=5 // pred_fallthru
        _
      %p851 = scmp.le.s32.totalorder 2, %s17
      // Predicated region
      $region49: #{tpu_custom_call.1} parent=5 // pred_check
        %p852 = pneg %p851
      $region50: #{tpu_custom_call.1} parent=5 // pred_check_branch
        %854 = sbr.rel (%p852) target = $region52
      $region51: #{tpu_custom_call.1} parent=5 // pred_region
        %s855 = ssub.s32 %s17, 2
        // Predicated region
        $region53: #{tpu_custom_call.1} parent=51 // pred_check
          %p856 = pneg %p156
        $region54: #{tpu_custom_call.1} parent=51 // pred_check_branch
          %858 = sbr.rel (%p856) target = $region56
        $region55: #{tpu_custom_call.1} parent=51 // pred_region
          %s859 = sand.u32 %s141, 1
          %s860 = scalar_lea.sflag [#allocation4], %s859
          %s861 = sand.u32 %s141, 1
          %s862 = smul.addr %s861, 8
          %s863 = scalar_lea.vmem [#allocation5], %s862
          %864 = dma.done %s860, 128
        $region56: #{tpu_custom_call.1} parent=51 // pred_fallthru
          _
      $region52: #{tpu_custom_call.1} parent=5 // pred_fallthru
        _
    $region6: #{tpu_custom_call.1} parent=1 // loop_footer
      %s21 = sadd.s32 1, %s17
    $region7: #{tpu_custom_call.1} parent=1 // loop_footer_branch
      %16 = sbr.rel target = $region3
    $region8: #{tpu_custom_call.1} parent=1 // loop_exit
      _
    %865 = vsyncpa [#allocation3], 1
    %s866 = scalar_lea.sflag [#allocation3], 1
    %867 = vsyncpa %s866, 1
    %868 = vsyncpa [#allocation4], 1
    %s869 = scalar_lea.sflag [#allocation4], 1
    %870 = vsyncpa %s869, 1

</llo_original>
